<compile_context>
chip_gen: v6e
topology: v6e:2x2x1
jax: 0.10.0
libtpu: 0.0.40
codegen_flags: <defaults>
</compile_context>

<pallas_src>
import jax
import jax.numpy as jnp
from jax.experimental import pallas as pl
from jax.experimental.pallas import tpu as pltpu


def merge_heads_kernel(cls_ref, w1_ref, b1_ref, w2p_ref, b2p_ref,
                       w2v_ref, b2v_ref, p_ref, v_ref):
    """p = mlp_p(cls), v = mlp_v(cls); first layers of both heads fused.

    cls_ref : (B, H)        CLS embedding (f32)
    w1_ref  : (H, Hp+Hv)    concat of mlp_p.fc1 / mlp_v.fc1 weights (in, out)
    b1_ref  : (1, Hp+Hv)    concat of first-layer biases
    w2p_ref : (Hp, Cp)      mlp_p second-layer weight
    b2p_ref : (1, Cp)
    w2v_ref : (Hv, Cv)      mlp_v second-layer weight
    b2v_ref : (1, Cv)
    p_ref   : (B, Cp)       p_output
    v_ref   : (B, Cv)       v_output
    """
    hp_dim = w2p_ref.shape[0]            # static

    x = cls_ref[...]                     # (B, H), already f32 — no extra casts

    # One fused first-layer matmul serving BOTH heads (shared input), followed
    # by a single fused ReLU over the concatenated activations.
    h = jnp.dot(x, w1_ref[...], preferred_element_type=jnp.float32) + b1_ref[...]
    h = jnp.maximum(h, 0.0)              # (B, Hp+Hv)

    # Lane-aligned split (Hp, Hv are multiples of 128 — no masked loads).
    h_p = h[:, :hp_dim]
    h_v = h[:, hp_dim:]

    p_ref[...] = (jnp.dot(h_p, w2p_ref[...], preferred_element_type=jnp.float32)
                  + b2p_ref[...]).astype(p_ref.dtype)
    v_ref[...] = (jnp.dot(h_v, w2v_ref[...], preferred_element_type=jnp.float32)
                  + b2v_ref[...]).astype(v_ref.dtype)


def merge_model_heads(cls_embedding, p_params, v_params):
    """Single grid-less pallas_call computing (p_output, v_output).

    Everything is tiny, so all operands are VMEM-resident full blocks.
    The first-layer weight/bias concatenation is one-time XLA work outside
    the kernel (it would be folded offline for frozen/static heads).
    """
    w1_p, b1_p, w2_p, b2_p = p_params
    w1_v, b1_v, w2_v, b2_v = v_params

    B, H = cls_embedding.shape
    Hp, Cp = w2_p.shape
    Hv, Cv = w2_v.shape

    # Shape couplings the kernel silently assumes — check them here.
    assert w1_p.shape == (H, Hp) and w1_v.shape == (H, Hv)
    assert b1_p.shape == (1, Hp) and b1_v.shape == (1, Hv)
    assert b2_p.shape == (1, Cp) and b2_v.shape == (1, Cv)
    assert Hp % 128 == 0 and Hv % 128 == 0, "head hidden dims must be lane-aligned"

    w1_cat = jnp.concatenate([w1_p, w1_v], axis=1)          # (H, Hp+Hv)
    b1_cat = jnp.concatenate([b1_p, b1_v], axis=1)          # (1, Hp+Hv)

    vmem = pl.BlockSpec(memory_space=pltpu.MemorySpace.VMEM)
    p_out, v_out = pl.pallas_call(
        merge_heads_kernel,
        out_shape=(jax.ShapeDtypeStruct((B, Cp), jnp.float32),
                   jax.ShapeDtypeStruct((B, Cv), jnp.float32)),
        in_specs=[vmem] * 7,
        out_specs=(vmem, vmem),
    )(cls_embedding, w1_cat, b1_cat, w2_p, b2_p, w2_v, b2_v)
    return p_out, v_out


def frozen_llm_last_hidden(input_ids, embed_table, pos_table, w_mix):
    """Frozen stand-in for `self.model(...).hidden_states[-1]`.

    # TODO(synk): the real pretrained `llm_model` (full attention stack) is an
    # external frozen dependency with no in-script equivalent; replaced by a
    # deterministic embedding + position + tanh-mix producing (B, S, H).
    """
    h = embed_table[input_ids] + pos_table[None, : input_ids.shape[1], :]
    return jnp.tanh(jnp.einsum("bsh,hk->bsk", h, w_mix))    # (B, S, H)


def reference_forward(last_hidden_state, p_params, v_params):
    """Pure-JAX reference mirroring Merge_Model.forward exactly."""
    w1_p, b1_p, w2_p, b2_p = p_params
    w1_v, b1_v, w2_v, b2_v = v_params
    cls = last_hidden_state[:, 0, :]
    p = jnp.maximum(cls @ w1_p + b1_p, 0.0) @ w2_p + b2_p
    v = jnp.maximum(cls @ w1_v + b1_v, 0.0) @ w2_v + b2_v
    return p, v


if __name__ == "__main__":
    # Small shapes consistent with the module.
    B = 2          # batch
    S = 8          # sequence_length
    VOCAB = 32     # stand-in LLM vocab
    H = 32         # LLM hidden size (cls_embedding dim)
    HP = 128       # mlp_p hidden width
    HV = 128       # mlp_v hidden width
    CP = 4         # p_output dim (e.g. policy classes)
    CV = 1         # v_output dim (e.g. scalar value)

    key = jax.random.PRNGKey(0)
    ks = jax.random.split(key, 12)

    input_ids = jax.random.randint(ks[0], (B, S), 0, VOCAB, dtype=jnp.int32)
    attention_mask = jnp.ones((B, S), dtype=jnp.int32)   # accepted, unused (no padding)

    # Frozen LLM stand-in parameters.
    embed_table = 0.1 * jax.random.normal(ks[1], (VOCAB, H), jnp.float32)
    pos_table = 0.02 * jax.random.normal(ks[2], (S, H), jnp.float32)
    w_mix = 0.1 * jax.random.normal(ks[3], (H, H), jnp.float32)

    # mlp_p: Linear(H, HP) -> ReLU -> Linear(HP, CP); weights stored (in, out)
    # so y = x @ W + b (identical to PyTorch's x @ W.T + b layout-wise).
    w1_p = 0.1 * jax.random.normal(ks[4], (H, HP), jnp.float32)
    b1_p = 0.1 * jax.random.normal(ks[5], (1, HP), jnp.float32)
    w2_p = 0.1 * jax.random.normal(ks[6], (HP, CP), jnp.float32)
    b2_p = 0.1 * jax.random.normal(ks[7], (1, CP), jnp.float32)
    # mlp_v: Linear(H, HV) -> ReLU -> Linear(HV, CV)
    w1_v = 0.1 * jax.random.normal(ks[8], (H, HV), jnp.float32)
    b1_v = 0.1 * jax.random.normal(ks[9], (1, HV), jnp.float32)
    w2_v = 0.1 * jax.random.normal(ks[10], (HV, CV), jnp.float32)
    b2_v = 0.1 * jax.random.normal(ks[11], (1, CV), jnp.float32)

    p_params = (w1_p, b1_p, w2_p, b2_p)
    v_params = (w1_v, b1_v, w2_v, b2_v)

    # Glue: frozen LLM producing the last hidden state.
    last_hidden = frozen_llm_last_hidden(input_ids, embed_table, pos_table, w_mix)

    # CLS extraction is free wrapper-side layout plumbing (contiguous slice).
    cls_embedding = last_hidden[:, 0, :]                     # (B, H)

    # Hot path: both heads in one Pallas kernel.
    p_out, v_out = merge_model_heads(cls_embedding, p_params, v_params)
    p_out, v_out = jax.block_until_ready((p_out, v_out))

    # Correctness check against the pure-JAX reference.
    p_ref, v_ref = reference_forward(last_hidden, p_params, v_params)
    assert p_out.shape == (B, CP) and v_out.shape == (B, CV)
    assert jnp.allclose(p_out, p_ref, rtol=1e-5, atol=1e-5), (p_out, p_ref)
    assert jnp.allclose(v_out, v_ref, rtol=1e-5, atol=1e-5), (v_out, v_ref)

    print("KERNEL_OK")
</pallas_src>

<mosaic_0001>
module attributes {stable_mosaic.version = 11 : i64} {
  func.func @merge_heads_kernel(%arg0: memref<2x32xf32, #tpu.memory_space<vmem>>, %arg1: memref<32x256xf32, #tpu.memory_space<vmem>>, %arg2: memref<1x256xf32, #tpu.memory_space<vmem>>, %arg3: memref<128x4xf32, #tpu.memory_space<vmem>>, %arg4: memref<1x4xf32, #tpu.memory_space<vmem>>, %arg5: memref<128x1xf32, #tpu.memory_space<vmem>>, %arg6: memref<1x1xf32, #tpu.memory_space<vmem>>, %arg7: memref<2x4xf32, #tpu.memory_space<vmem>>, %arg8: memref<2x1xf32, #tpu.memory_space<vmem>>) attributes {dimension_semantics = [], scalar_prefetch = 0 : i64, scratch_operands = 0 : i64, tpu.core_type = #tpu.core_type<tc>} {
    %c0 = arith.constant 0 : index
    %c0_0 = arith.constant 0 : index
    %0 = vector.load %arg0[%c0, %c0_0] : memref<2x32xf32, #tpu.memory_space<vmem>>, vector<2x32xf32>
    %c0_1 = arith.constant 0 : index
    %c0_2 = arith.constant 0 : index
    %1 = vector.load %arg1[%c0_1, %c0_2] : memref<32x256xf32, #tpu.memory_space<vmem>>, vector<32x256xf32>
    %cst = arith.constant dense<0.000000e+00> : vector<2x256xf32>
    %2 = tpu.matmul %0, %1, %cst {dimension_numbers = #tpu.dot_dimension_numbers<[1], [0], [0], [1], [0, 0, 1, 1], [], []>} : vector<2x32xf32>, vector<32x256xf32>, vector<2x256xf32> -> vector<2x256xf32>
    %c0_3 = arith.constant 0 : index
    %c0_4 = arith.constant 0 : index
    %3 = vector.load %arg2[%c0_3, %c0_4] : memref<1x256xf32, #tpu.memory_space<vmem>>, vector<1x256xf32>
    %4 = vector.broadcast %3 : vector<1x256xf32> to vector<2x256xf32>
    %5 = arith.addf %2, %4 : vector<2x256xf32>
    %cst_5 = arith.constant 0.000000e+00 : f32
    %6 = vector.broadcast %cst_5 : f32 to vector<2x256xf32>
    %7 = arith.maximumf %5, %6 : vector<2x256xf32>
    %8 = vector.extract_strided_slice %7 {offsets = [0, 0], sizes = [2, 128], strides = [1, 1]} : vector<2x256xf32> to vector<2x128xf32>
    %9 = vector.extract_strided_slice %7 {offsets = [0, 128], sizes = [2, 128], strides = [1, 1]} : vector<2x256xf32> to vector<2x128xf32>
    %c0_6 = arith.constant 0 : index
    %c0_7 = arith.constant 0 : index
    %10 = vector.load %arg3[%c0_6, %c0_7] : memref<128x4xf32, #tpu.memory_space<vmem>>, vector<128x4xf32>
    %cst_8 = arith.constant dense<0.000000e+00> : vector<2x4xf32>
    %11 = tpu.matmul %8, %10, %cst_8 {dimension_numbers = #tpu.dot_dimension_numbers<[1], [0], [0], [1], [0, 0, 1, 1], [], []>} : vector<2x128xf32>, vector<128x4xf32>, vector<2x4xf32> -> vector<2x4xf32>
    %c0_9 = arith.constant 0 : index
    %c0_10 = arith.constant 0 : index
    %12 = vector.load %arg4[%c0_9, %c0_10] : memref<1x4xf32, #tpu.memory_space<vmem>>, vector<1x4xf32>
    %13 = vector.broadcast %12 : vector<1x4xf32> to vector<2x4xf32>
    %14 = arith.addf %11, %13 : vector<2x4xf32>
    %c0_11 = arith.constant 0 : index
    %c0_12 = arith.constant 0 : index
    %15 = vector.load %arg7[%c0_11, %c0_12] : memref<2x4xf32, #tpu.memory_space<vmem>>, vector<2x4xf32>
    tpu.vector_store %arg7[%c0_11, %c0_12], %14 {strides = array<i32>} : memref<2x4xf32, #tpu.memory_space<vmem>>, vector<2x4xf32>,
    %c0_13 = arith.constant 0 : index
    %c0_14 = arith.constant 0 : index
    %16 = vector.load %arg5[%c0_13, %c0_14] : memref<128x1xf32, #tpu.memory_space<vmem>>, vector<128x1xf32>
    %cst_15 = arith.constant dense<0.000000e+00> : vector<2x1xf32>
    %17 = tpu.matmul %9, %16, %cst_15 {dimension_numbers = #tpu.dot_dimension_numbers<[1], [0], [0], [1], [0, 0, 1, 1], [], []>} : vector<2x128xf32>, vector<128x1xf32>, vector<2x1xf32> -> vector<2x1xf32>
    %c0_16 = arith.constant 0 : index
    %c0_17 = arith.constant 0 : index
    %18 = vector.load %arg6[%c0_16, %c0_17] : memref<1x1xf32, #tpu.memory_space<vmem>>, vector<1x1xf32>
    %19 = vector.broadcast %18 : vector<1x1xf32> to vector<2x1xf32>
    %20 = arith.addf %17, %19 : vector<2x1xf32>
    %c0_18 = arith.constant 0 : index
    %c0_19 = arith.constant 0 : index
    %21 = vector.load %arg8[%c0_18, %c0_19] : memref<2x1xf32, #tpu.memory_space<vmem>>, vector<2x1xf32>
    tpu.vector_store %arg8[%c0_18, %c0_19], %20 {strides = array<i32>} : memref<2x1xf32, #tpu.memory_space<vmem>>, vector<2x1xf32>,
    return
  }
}

</mosaic_0001>

<llo_original>
// kernel: tpu_custom_call.1
$region0: #{tpu_custom_call.1}
  #allocation0 [shape = 'u32[]', space=smem, size = 0x4, offset = 0x4, fixed_abs, tag = 'smem constant byte address 0x4 - core index']
  #allocation1 [shape = 'u32[144,128]{1,0:T(1,128)}', space=vmem, size = 0x12000, scoped, tag = 'internal scratch']
  #allocation2 [shape = 'f32[1,1]{1,0:T(1,128)S(1)}', space=vmem, size = 0x200, scoped, tag = 'scoped memory for tpu_custom_call.1']
  %s0 = inlined_call_operand.vmem [shape: f32[2,32], index: 0, kind: input, shape index: {}]
  %s1 = inlined_call_operand.vmem [shape: f32[32,256], index: 1, kind: input, shape index: {}]
  %s2 = inlined_call_operand.vmem [shape: f32[1,256], index: 2, kind: input, shape index: {}]
  %s3 = inlined_call_operand.vmem [shape: f32[128,4], index: 3, kind: input, shape index: {}]
  %s4 = inlined_call_operand.vmem [shape: f32[1,4], index: 4, kind: input, shape index: {}]
  %s5 = inlined_call_operand.vmem [shape: f32[128,1], index: 5, kind: input, shape index: {}]
  %s6 = inlined_call_operand.<no memory space> [shape: f32[1,1], index: 6, kind: input, shape index: {}]
  %s7 = inlined_call_operand.hbm [shape: f32[2,4], index: 7, kind: output, shape index: {0}]
  %s8 = inlined_call_operand.vmem [shape: f32[2,1], index: 8, kind: output, shape index: {1}]
  %9 = xla_tuple %s7, %s8
  %s10 = sld [smem:[#allocation0]]
  $region46: #{tpu_custom_call.1} parent=0
    _
  %s12 = ssub.s32 1, %s10
  %s13 = scalar_select 0, %s12, %s10
  %v14 = vstv %s6
  %15 = vst [vmem:[#allocation2] sm:$0x1] %v14
  $region1: #{tpu_custom_call.1} parent=0
    #allocation3 [shape = 'u8[1024]{0}', space=vmem, size = 0x400, scoped, tag = 'output window, operand 0, single buffered']
    #allocation4 [shape = 's32[1]{0}', space=sflag, size = 0x4, scoped, tag = 'scoped memory for tpu_custom_call.1']
    %16 = vsyncpa [#allocation4], 0
    // Predicated region
    $region2: #{tpu_custom_call.1} parent=1 // pred_check
      _
    $region3: #{tpu_custom_call.1} parent=1 // pred_check_branch
      %18 = sbr.rel (0) target = $region5
    $region4: #{tpu_custom_call.1} parent=1 // pred_region
      _
    $region5: #{tpu_custom_call.1} parent=1 // pred_fallthru
      _
    // Predicated region
    $region6: #{tpu_custom_call.1} parent=1 // pred_check
      _
    $region7: #{tpu_custom_call.1} parent=1 // pred_check_branch
      %20 = sbr.rel (0) target = $region9
    $region8: #{tpu_custom_call.1} parent=1 // pred_region
      _
    $region9: #{tpu_custom_call.1} parent=1 // pred_fallthru
      _
    // Predicated region
    $region10: #{tpu_custom_call.1} parent=1 // pred_check
      _
    $region11: #{tpu_custom_call.1} parent=1 // pred_check_branch
      %22 = sbr.rel (0) target = $region13
    $region12: #{tpu_custom_call.1} parent=1 // pred_region
      _
    $region13: #{tpu_custom_call.1} parent=1 // pred_fallthru
      _
    // Predicated region
    $region14: #{tpu_custom_call.1} parent=1 // pred_check
      _
    $region15: #{tpu_custom_call.1} parent=1 // pred_check_branch
      %24 = sbr.rel (0) target = $region17
    $region16: #{tpu_custom_call.1} parent=1 // pred_region
      _
    $region17: #{tpu_custom_call.1} parent=1 // pred_fallthru
      _
    // Predicated region
    $region18: #{tpu_custom_call.1} parent=1 // pred_check
      _
    $region19: #{tpu_custom_call.1} parent=1 // pred_check_branch
      %26 = sbr.rel (0) target = $region21
    $region20: #{tpu_custom_call.1} parent=1 // pred_region
      _
    $region21: #{tpu_custom_call.1} parent=1 // pred_fallthru
      _
    // Predicated region
    $region22: #{tpu_custom_call.1} parent=1 // pred_check
      _
    $region23: #{tpu_custom_call.1} parent=1 // pred_check_branch
      %28 = sbr.rel (0) target = $region25
    $region24: #{tpu_custom_call.1} parent=1 // pred_region
      _
    $region25: #{tpu_custom_call.1} parent=1 // pred_fallthru
      _
    // Predicated region
    $region26: #{tpu_custom_call.1} parent=1 // pred_check
      _
    $region27: #{tpu_custom_call.1} parent=1 // pred_check_branch
      %30 = sbr.rel (0) target = $region29
    $region28: #{tpu_custom_call.1} parent=1 // pred_region
      _
    $region29: #{tpu_custom_call.1} parent=1 // pred_fallthru
      _
    %v31 = vld [vmem:[%s0] sm:$0x3]
    %v32 = vld [vmem:[%s1] sm:$0xff]
    %v33 = vld [vmem:[%s1 + $0x8] sm:$0xff]
    %v34 = vld [vmem:[%s1 + $0x10] sm:$0xff]
    %v35 = vld [vmem:[%s1 + $0x18] sm:$0xff]
    %v36 = vld [vmem:[%s1 + $0x20] sm:$0xff]
    %v37 = vld [vmem:[%s1 + $0x28] sm:$0xff]
    %v38 = vld [vmem:[%s1 + $0x30] sm:$0xff]
    %v39 = vld [vmem:[%s1 + $0x38] sm:$0xff]
    %v40 = vld [vmem:[%s2] sm:$0x3]
    %v42 = vlaneseq
    %v43 = vshrl.u32 %v42, 7
    %v44 = vsub.s32 0, %v43
    %v45 = vrot.slane %v40, %v44
    %v46 = vlaneseq
    %v47 = vshrl.u32 %v46, 7
    %v48 = vsub.s32 1, %v47
    %v49 = vrot.slane %v40, %v48
    %vm52 = vcmask 261120
    %v54 = vsel %vm52, %v31, 0
    %56 = vmatprep.subr.mxu0 0.0
    %57 = vmatpush1.msra.mxu0 0.0
    %58 = vmatprep.subr.mxu0 0.0
    %59 = vmatpush1.msra.mxu0 0.0
    %60 = vmatprep.subr.mxu0 0.0
    %61 = vmatpush1.msra.mxu0 0.0
    %62 = vmatprep.subr.mxu0 0.0
    %63 = vmatpush1.msra.mxu0 0.0
    %64 = vmatprep.subr.mxu0 0.0
    %65 = vmatpush1.msra.mxu0 0.0
    %66 = vmatprep.subr.mxu0 0.0
    %67 = vmatpush1.msra.mxu0 0.0
    %68 = vmatprep.subr.mxu0 0.0
    %69 = vmatpush1.msra.mxu0 0.0
    %70 = vmatprep.subr.mxu0 0.0
    %71 = vmatpush1.msra.mxu0 0.0
    %72 = vmatprep.subr.mxu0 0.0
    %73 = vmatpush1.msra.mxu0 0.0
    %74 = vmatprep.subr.mxu0 0.0
    %75 = vmatpush1.msra.mxu0 0.0
    %76 = vmatprep.subr.mxu0 0.0
    %77 = vmatpush1.msra.mxu0 0.0
    %78 = vmatprep.subr.mxu0 0.0
    %79 = vmatpush1.msra.mxu0 0.0
    %80 = vmatprep.subr.mxu0 %v39
    %81 = vmatpush1.msra.mxu0 %v38
    %82 = vmatprep.subr.mxu0 %v37
    %83 = vmatpush1.msra.mxu0 %v36
    %84 = vmatprep.subr.mxu0 %v35
    %85 = vmatpush1.msra.mxu0 %v34
    %86 = vmatprep.subr.mxu0 %v33
    %87 = vmatpush1.msra.mxu0 %v32
    %88 = vmatprep.subr.mxu0 0.0
    %89 = vmatpush2.msra.mxu0 0.0
    %90 = vmatprep.subr.mxu0 0.0
    %91 = vmatpush2.msra.mxu0 0.0
    %92 = vmatprep.subr.mxu0 0.0
    %93 = vmatpush2.msra.mxu0 0.0
    %94 = vmatprep.subr.mxu0 0.0
    %95 = vmatpush2.msra.mxu0 0.0
    %96 = vmatprep.subr.mxu0 0.0
    %97 = vmatpush2.msra.mxu0 0.0
    %98 = vmatprep.subr.mxu0 0.0
    %99 = vmatpush2.msra.mxu0 0.0
    %100 = vmatprep.subr.mxu0 0.0
    %101 = vmatpush2.msra.mxu0 0.0
    %102 = vmatprep.subr.mxu0 0.0
    %103 = vmatpush2.msra.mxu0 0.0
    %104 = vmatprep.subr.mxu0 0.0
    %105 = vmatpush2.msra.mxu0 0.0
    %106 = vmatprep.subr.mxu0 0.0
    %107 = vmatpush2.msra.mxu0 0.0
    %108 = vmatprep.subr.mxu0 0.0
    %109 = vmatpush2.msra.mxu0 0.0
    %110 = vmatprep.subr.mxu0 0.0
    %111 = vmatpush2.msra.mxu0 0.0
    %112 = vmatprep.subr.mxu0 0.0
    %113 = vmatpush2.msra.mxu0 0.0
    %114 = vmatprep.subr.mxu0 0.0
    %115 = vmatpush2.msra.mxu0 0.0
    %116 = vmatprep.subr.mxu0 0.0
    %117 = vmatpush2.msra.mxu0 0.0
    %118 = vmatprep.subr.mxu0 0.0
    %119 = vmatpush2.msra.mxu0 0.0
    %120 = vmatprep.mubr.f32.mxu0 0.0
    %121 = vmatmul.mubr.f32.gmra.mxu0 %v54
    %v122 = vpop.f32.mrf.mxu0
    %v123 = vadd.f32 %v45, %v122
    %v124 = vpop.f32.mrf.mxu0
    %v125 = vadd.f32 %v49, %v124
    %126 = vdwg.mxu0
    %v127 = vmax.f32 %v123, 0.0
    %v128 = vmax.f32 %v125, 0.0
    %v129 = vld [vmem:[%s3] sm:$0xff]
    %v130 = vld [vmem:[%s3 + $0x8] sm:$0xff]
    %v131 = vld [vmem:[%s3 + $0x10] sm:$0xff]
    %v132 = vld [vmem:[%s3 + $0x18] sm:$0xff]
    %v133 = vld [vmem:[%s3 + $0x20] sm:$0xff]
    %v134 = vld [vmem:[%s3 + $0x28] sm:$0xff]
    %v135 = vld [vmem:[%s3 + $0x30] sm:$0xff]
    %v136 = vld [vmem:[%s3 + $0x38] sm:$0xff]
    %v137 = vld [vmem:[%s3 + $0x40] sm:$0xff]
    %v138 = vld [vmem:[%s3 + $0x48] sm:$0xff]
    %v139 = vld [vmem:[%s3 + $0x50] sm:$0xff]
    %v140 = vld [vmem:[%s3 + $0x58] sm:$0xff]
    %v141 = vld [vmem:[%s3 + $0x60] sm:$0xff]
    %v142 = vld [vmem:[%s3 + $0x68] sm:$0xff]
    %v143 = vld [vmem:[%s3 + $0x70] sm:$0xff]
    %v144 = vld [vmem:[%s3 + $0x78] sm:$0xff]
    %v145 = vld [vmem:[%s4] sm:$0x1]
    %v147 = vlaneseq
    %v148 = vshrl.u32 %v147, 7
    %v149 = vsub.s32 0, %v148
    %v150 = vrot.slane %v145, %v149
    %152 = vmatprep.subr.mxu0 0.0
    %153 = vmatpush1.msra.mxu0 %v144
    %154 = vmatprep.subr.mxu0 0.0
    %155 = vmatpush1.msra.mxu0 %v143
    %156 = vmatprep.subr.mxu0 0.0
    %157 = vmatpush1.msra.mxu0 %v142
    %158 = vmatprep.subr.mxu0 0.0
    %159 = vmatpush1.msra.mxu0 %v141
    %160 = vmatprep.subr.mxu0 0.0
    %161 = vmatpush1.msra.mxu0 %v140
    %162 = vmatprep.subr.mxu0 0.0
    %163 = vmatpush1.msra.mxu0 %v139
    %164 = vmatprep.subr.mxu0 0.0
    %165 = vmatpush1.msra.mxu0 %v138
    %166 = vmatprep.subr.mxu0 0.0
    %167 = vmatpush1.msra.mxu0 %v137
    %168 = vmatprep.subr.mxu0 0.0
    %169 = vmatpush1.msra.mxu0 %v136
    %170 = vmatprep.subr.mxu0 0.0
    %171 = vmatpush1.msra.mxu0 %v135
    %172 = vmatprep.subr.mxu0 0.0
    %173 = vmatpush1.msra.mxu0 %v134
    %174 = vmatprep.subr.mxu0 0.0
    %175 = vmatpush1.msra.mxu0 %v133
    %176 = vmatprep.subr.mxu0 0.0
    %177 = vmatpush1.msra.mxu0 %v132
    %178 = vmatprep.subr.mxu0 0.0
    %179 = vmatpush1.msra.mxu0 %v131
    %180 = vmatprep.subr.mxu0 0.0
    %181 = vmatpush1.msra.mxu0 %v130
    %182 = vmatprep.subr.mxu0 0.0
    %183 = vmatpush1.msra.mxu0 %v129
    %184 = vmatprep.subr.mxu0 0.0
    %185 = vmatpush2.msra.mxu0 0.0
    %186 = vmatprep.subr.mxu0 0.0
    %187 = vmatpush2.msra.mxu0 0.0
    %188 = vmatprep.subr.mxu0 0.0
    %189 = vmatpush2.msra.mxu0 0.0
    %190 = vmatprep.subr.mxu0 0.0
    %191 = vmatpush2.msra.mxu0 0.0
    %192 = vmatprep.subr.mxu0 0.0
    %193 = vmatpush2.msra.mxu0 0.0
    %194 = vmatprep.subr.mxu0 0.0
    %195 = vmatpush2.msra.mxu0 0.0
    %196 = vmatprep.subr.mxu0 0.0
    %197 = vmatpush2.msra.mxu0 0.0
    %198 = vmatprep.subr.mxu0 0.0
    %199 = vmatpush2.msra.mxu0 0.0
    %200 = vmatprep.subr.mxu0 0.0
    %201 = vmatpush2.msra.mxu0 0.0
    %202 = vmatprep.subr.mxu0 0.0
    %203 = vmatpush2.msra.mxu0 0.0
    %204 = vmatprep.subr.mxu0 0.0
    %205 = vmatpush2.msra.mxu0 0.0
    %206 = vmatprep.subr.mxu0 0.0
    %207 = vmatpush2.msra.mxu0 0.0
    %208 = vmatprep.subr.mxu0 0.0
    %209 = vmatpush2.msra.mxu0 0.0
    %210 = vmatprep.subr.mxu0 0.0
    %211 = vmatpush2.msra.mxu0 0.0
    %212 = vmatprep.subr.mxu0 0.0
    %213 = vmatpush2.msra.mxu0 0.0
    %214 = vmatprep.subr.mxu0 0.0
    %215 = vmatpush2.msra.mxu0 0.0
    %216 = vmatprep.mubr.f32.mxu0 0.0
    %217 = vmatmul.mubr.f32.gmra.mxu0 %v127
    %v218 = vpop.f32.mrf.mxu0
    %v219 = vadd.f32 %v150, %v218
    %v220 = vpop.f32.mrf.mxu0
    %221 = vdwg.mxu0
    %vm222 = vcmask 25600
    %223 = vst.msk [vmem:[#allocation3] sm:$0x3] %vm222, %v219
    %v224 = vld [vmem:[%s5] sm:$0xff]
    %v225 = vld [vmem:[%s5 + $0x8] sm:$0xff]
    %v226 = vld [vmem:[%s5 + $0x10] sm:$0xff]
    %v227 = vld [vmem:[%s5 + $0x18] sm:$0xff]
    %v228 = vld [vmem:[%s5 + $0x20] sm:$0xff]
    %v229 = vld [vmem:[%s5 + $0x28] sm:$0xff]
    %v230 = vld [vmem:[%s5 + $0x30] sm:$0xff]
    %v231 = vld [vmem:[%s5 + $0x38] sm:$0xff]
    %v232 = vld [vmem:[%s5 + $0x40] sm:$0xff]
    %v233 = vld [vmem:[%s5 + $0x48] sm:$0xff]
    %v234 = vld [vmem:[%s5 + $0x50] sm:$0xff]
    %v235 = vld [vmem:[%s5 + $0x58] sm:$0xff]
    %v236 = vld [vmem:[%s5 + $0x60] sm:$0xff]
    %v237 = vld [vmem:[%s5 + $0x68] sm:$0xff]
    %v238 = vld [vmem:[%s5 + $0x70] sm:$0xff]
    %v239 = vld [vmem:[%s5 + $0x78] sm:$0xff]
    %v240 = vld [vmem:[#allocation2] sm:$0x1]
    %v242 = vlaneseq
    %v243 = vshrl.u32 %v242, 7
    %v244 = vsub.s32 0, %v243
    %v245 = vrot.slane %v240, %v244
    %247 = vmatprep.subr.mxu0 0.0
    %248 = vmatpush1.msra.mxu0 %v239
    %249 = vmatprep.subr.mxu0 0.0
    %250 = vmatpush1.msra.mxu0 %v238
    %251 = vmatprep.subr.mxu0 0.0
    %252 = vmatpush1.msra.mxu0 %v237
    %253 = vmatprep.subr.mxu0 0.0
    %254 = vmatpush1.msra.mxu0 %v236
    %255 = vmatprep.subr.mxu0 0.0
    %256 = vmatpush1.msra.mxu0 %v235
    %257 = vmatprep.subr.mxu0 0.0
    %258 = vmatpush1.msra.mxu0 %v234
    %259 = vmatprep.subr.mxu0 0.0
    %260 = vmatpush1.msra.mxu0 %v233
    %261 = vmatprep.subr.mxu0 0.0
    %262 = vmatpush1.msra.mxu0 %v232
    %263 = vmatprep.subr.mxu0 0.0
    %264 = vmatpush1.msra.mxu0 %v231
    %265 = vmatprep.subr.mxu0 0.0
    %266 = vmatpush1.msra.mxu0 %v230
    %267 = vmatprep.subr.mxu0 0.0
    %268 = vmatpush1.msra.mxu0 %v229
    %269 = vmatprep.subr.mxu0 0.0
    %270 = vmatpush1.msra.mxu0 %v228
    %271 = vmatprep.subr.mxu0 0.0
    %272 = vmatpush1.msra.mxu0 %v227
    %273 = vmatprep.subr.mxu0 0.0
    %274 = vmatpush1.msra.mxu0 %v226
    %275 = vmatprep.subr.mxu0 0.0
    %276 = vmatpush1.msra.mxu0 %v225
    %277 = vmatprep.subr.mxu0 0.0
    %278 = vmatpush1.msra.mxu0 %v224
    %279 = vmatprep.subr.mxu0 0.0
    %280 = vmatpush2.msra.mxu0 0.0
    %281 = vmatprep.subr.mxu0 0.0
    %282 = vmatpush2.msra.mxu0 0.0
    %283 = vmatprep.subr.mxu0 0.0
    %284 = vmatpush2.msra.mxu0 0.0
    %285 = vmatprep.subr.mxu0 0.0
    %286 = vmatpush2.msra.mxu0 0.0
    %287 = vmatprep.subr.mxu0 0.0
    %288 = vmatpush2.msra.mxu0 0.0
    %289 = vmatprep.subr.mxu0 0.0
    %290 = vmatpush2.msra.mxu0 0.0
    %291 = vmatprep.subr.mxu0 0.0
    %292 = vmatpush2.msra.mxu0 0.0
    %293 = vmatprep.subr.mxu0 0.0
    %294 = vmatpush2.msra.mxu0 0.0
    %295 = vmatprep.subr.mxu0 0.0
    %296 = vmatpush2.msra.mxu0 0.0
    %297 = vmatprep.subr.mxu0 0.0
    %298 = vmatpush2.msra.mxu0 0.0
    %299 = vmatprep.subr.mxu0 0.0
    %300 = vmatpush2.msra.mxu0 0.0
    %301 = vmatprep.subr.mxu0 0.0
    %302 = vmatpush2.msra.mxu0 0.0
    %303 = vmatprep.subr.mxu0 0.0
    %304 = vmatpush2.msra.mxu0 0.0
    %305 = vmatprep.subr.mxu0 0.0
    %306 = vmatpush2.msra.mxu0 0.0
    %307 = vmatprep.subr.mxu0 0.0
    %308 = vmatpush2.msra.mxu0 0.0
    %309 = vmatprep.subr.mxu0 0.0
    %310 = vmatpush2.msra.mxu0 0.0
    %311 = vmatprep.mubr.f32.mxu0 0.0
    %312 = vmatmul.mubr.f32.gmra.mxu0 %v128
    %v313 = vpop.f32.mrf.mxu0
    %v314 = vadd.f32 %v245, %v313
    %v315 = vpop.f32.mrf.mxu0
    %316 = vdwg.mxu0
    %vm317 = vcmask 1024
    %318 = vst.msk [vmem:[%s8] sm:$0x3] %vm317, %v314
    // Predicated region
    $region30: #{tpu_custom_call.1} parent=1 // pred_check
      _
    $region31: #{tpu_custom_call.1} parent=1 // pred_check_branch
      %320 = sbr.rel (0) target = $region33
    $region32: #{tpu_custom_call.1} parent=1 // pred_region
      %s322 = ssub.s32 32, 32
      %323 = vsyncadd [#allocation4], %s322
      %s325 = sshll.u32 [#allocation3], 4
      %s326 = int_to_ptr.vmem [resolvable:$true] %s325
      %328 = dma.vmem_to_hbm [thread:$0]  %s326, 32, %s7, [#allocation4]
    $region33: #{tpu_custom_call.1} parent=1 // pred_fallthru
      _
    // Predicated region
    $region34: #{tpu_custom_call.1} parent=1 // pred_check
      _
    $region35: #{tpu_custom_call.1} parent=1 // pred_check_branch
      %330 = sbr.rel (0) target = $region37
    $region36: #{tpu_custom_call.1} parent=1 // pred_region
      _
    $region37: #{tpu_custom_call.1} parent=1 // pred_fallthru
      _
    // Predicated region
    $region38: #{tpu_custom_call.1} parent=1 // pred_check
      _
    $region39: #{tpu_custom_call.1} parent=1 // pred_check_branch
      %332 = sbr.rel (0) target = $region41
    $region40: #{tpu_custom_call.1} parent=1 // pred_region
      %333 = dma.done [#allocation4], 32
    $region41: #{tpu_custom_call.1} parent=1 // pred_fallthru
      _
    // Predicated region
    $region42: #{tpu_custom_call.1} parent=1 // pred_check
      _
    $region43: #{tpu_custom_call.1} parent=1 // pred_check_branch
      %335 = sbr.rel (0) target = $region45
    $region44: #{tpu_custom_call.1} parent=1 // pred_region
      _
    $region45: #{tpu_custom_call.1} parent=1 // pred_fallthru
      _
    %336 = vsyncpa [#allocation4], 1

</llo_original>
